<compile_context>
chip_gen: v7x
topology: tpu7x:2x2x1
jax: 0.10.0
libtpu: 0.0.40
codegen_flags: <defaults>
</compile_context>

<pallas_src>
import jax
import jax.numpy as jnp
from jax import lax
from jax.experimental import pallas as pl
from jax.experimental.pallas import tpu as pltpu


def _make_kernel(nb, C, H, W, pad):
    HW = H * W

    def kernel(x_ref, lm_ref, w1_ref, w2_ref, w3_ref, out_ref, pad_ref):
        # x_ref:   (nb, C, HW) block, native dtype (lane-dense last dim).
        # lm_ref:  (2, 1, HW) f32 column masks (dx = -1 / dx = +1).
        # w1/w2/w3: flat f32 (18,)/(9,)/(9,) conv weights in SMEM.
        # pad_ref: (nb, HW + 2*pad) f32 zero-padded flat scratch for the conv taps.
        x = x_ref[...]
        avg = jnp.mean(x.astype(jnp.float32), axis=1)      # (nb, HW) == torch.mean(dim=1)
        mx = jnp.max(x, axis=1).astype(jnp.float32)        # (nb, HW) == torch.max(dim=1)[0]

        # Zero the scratch once per step (only the pads matter; interior is overwritten).
        pad_ref[...] = jnp.zeros_like(pad_ref)

        m_left = lm_ref[0]                   # (1, HW): zero where col == 0
        m_right = lm_ref[1]                  # (1, HW): zero where col == W - 1
        dx_mask = (m_left, None, m_right)    # indexed by kx

        def conv3x3(img, w_ref, w_base, acc):
            # img: (nb, HW) f32 = row-major flattened (H, W) map. Cross-correlation,
            # padding=1, no bias (matches nn.Conv2d): tap offset = (ky-1)*W + (kx-1).
            pad_ref[:, pad:pad + HW] = img
            for ky in range(3):
                for kx in range(3):
                    w = w_ref[w_base + ky * 3 + kx]
                    off = pad + (ky - 1) * W + (kx - 1)
                    tap = pad_ref[:, off:off + HW]
                    m = dx_mask[kx]
                    if m is not None:
                        tap = tap * m        # kill row-wrap for the dx = +-1 taps
                    acc = acc + w * tap
            return acc

        zero = jnp.zeros((nb, HW), jnp.float32)
        y1 = conv3x3(avg, w1_ref, 0, zero)   # conv1, input channel 0 (avg)
        y1 = conv3x3(mx, w1_ref, 9, y1)      # conv1, input channel 1 (max)
        y2 = conv3x3(y1, w2_ref, 0, zero)    # conv2
        y3 = conv3x3(y2, w3_ref, 0, zero)    # conv3

        att = jax.nn.sigmoid(y3)                         # (nb, HW), f32
        att = att[:, None, :].astype(x.dtype)            # (nb, 1, HW); bulk math in x dtype
        out_ref[...] = (x * att).astype(out_ref.dtype)   # lane-dense broadcast multiply/store

    return kernel


def spatial_attention(x, w1, w2, w3, *, block_bytes_target=4 << 20):
    """x: (N, C, H, W). w1: (1, 2, 3, 3), w2/w3: (1, 1, 3, 3). No conv bias."""
    N, C, H, W = x.shape
    HW = H * W
    itemsize = jnp.dtype(x.dtype).itemsize

    # Lane-dense views (last dim H*W >= 128 for the test shapes).
    x2 = x.reshape(N, C, HW)
    w1f = w1.reshape(-1).astype(jnp.float32)   # (18,)  OIHW -> ci*9 + ky*3 + kx
    w2f = w2.reshape(-1).astype(jnp.float32)   # (9,)
    w3f = w3.reshape(-1).astype(jnp.float32)   # (9,)

    # Column masks for the dx = -1 / +1 taps of the flattened 3x3 conv.
    col = jnp.arange(HW, dtype=jnp.int32) % W
    lane_mask = jnp.stack(
        [(col != 0).astype(jnp.float32), (col != W - 1).astype(jnp.float32)]
    ).reshape(2, 1, HW)

    # Batch block: largest divisor of N whose slab stays under the target
    # (whole tensor in one grid step for small problems).
    per_batch = C * HW * itemsize
    nb = 1
    for d in range(1, N + 1):
        if N % d == 0 and d * per_batch <= block_bytes_target:
            nb = d
    grid = (N // nb,)
    # TODO(synk): for very large C*H*W a single (nb, C, HW) block exceeds VMEM; that case
    # needs a two-pass variant (compute att per batch, then apply x*att tiled over C).

    pad = ((W + 1 + 127) // 128) * 128     # >= W+1 (absorbs dy=+-1), 128-aligned interior
    pw = HW + 2 * pad

    block_bytes = nb * C * HW * itemsize
    needed = 4 * block_bytes + nb * pw * 4 + 4 * 2 * HW * 4   # 2x in + 2x out + scratch + masks
    vmem_limit = int(min(64 << 20, max(needed + (4 << 20), 32 << 20)))

    out2 = pl.pallas_call(
        _make_kernel(nb, C, H, W, pad),
        out_shape=jax.ShapeDtypeStruct((N, C, HW), x.dtype),
        grid=grid,
        in_specs=[
            pl.BlockSpec((nb, C, HW), lambda i: (i, 0, 0)),
            pl.BlockSpec((2, 1, HW), lambda i: (0, 0, 0)),
            pl.BlockSpec(memory_space=pltpu.MemorySpace.SMEM),
            pl.BlockSpec(memory_space=pltpu.MemorySpace.SMEM),
            pl.BlockSpec(memory_space=pltpu.MemorySpace.SMEM),
        ],
        out_specs=pl.BlockSpec((nb, C, HW), lambda i: (i, 0, 0)),
        scratch_shapes=[pltpu.VMEM((nb, pw), jnp.float32)],
        compiler_params=pltpu.CompilerParams(
            dimension_semantics=("parallel",),
            vmem_limit_bytes=vmem_limit,
        ),
    )(x2, lane_mask, w1f, w2f, w3f)
    return out2.reshape(N, C, H, W)


def spatial_attention_reference(x, w1, w2, w3):
    """Pure-JAX reference mirroring the PyTorch forward pass."""
    avg = jnp.mean(x, axis=1, keepdims=True)
    mx = jnp.max(x, axis=1, keepdims=True)
    xi = jnp.concatenate([avg, mx], axis=1)
    dn = ("NCHW", "OIHW", "NCHW")
    padc = ((1, 1), (1, 1))
    y = lax.conv_general_dilated(xi, w1, (1, 1), padc, dimension_numbers=dn)
    y = lax.conv_general_dilated(y, w2, (1, 1), padc, dimension_numbers=dn)
    y = lax.conv_general_dilated(y, w3, (1, 1), padc, dimension_numbers=dn)
    return x * jax.nn.sigmoid(y)


if __name__ == "__main__":
    key = jax.random.PRNGKey(0)
    kx, k1, k2, k3 = jax.random.split(key, 4)

    N, C, H, W = 2, 4, 16, 16
    x = jax.random.normal(kx, (N, C, H, W), jnp.float32)

    # Deterministic synthetic weights (same shapes as the nn.Conv2d layers, no bias).
    w1 = jax.random.normal(k1, (1, 2, 3, 3), jnp.float32) * 0.3
    w2 = jax.random.normal(k2, (1, 1, 3, 3), jnp.float32) * 0.3
    w3 = jax.random.normal(k3, (1, 1, 3, 3), jnp.float32) * 0.3

    out = jax.block_until_ready(spatial_attention(x, w1, w2, w3))
    ref = spatial_attention_reference(x, w1, w2, w3)

    assert out.shape == ref.shape and out.dtype == ref.dtype
    max_err = float(jnp.max(jnp.abs(out - ref)))
    assert jnp.allclose(out, ref, atol=1e-5, rtol=1e-5), (
        "mismatch vs reference: max abs err = %g" % max_err
    )
    print("KERNEL_OK")
</pallas_src>

<mosaic_0001>
module attributes {stable_mosaic.version = 11 : i64} {
  func.func @kernel(%arg0: i32, %arg1: memref<2x4x256xf32, #tpu.memory_space<vmem>>, %arg2: memref<2x1x256xf32, #tpu.memory_space<vmem>>, %arg3: memref<18xf32, #tpu.memory_space<smem>>, %arg4: memref<9xf32, #tpu.memory_space<smem>>, %arg5: memref<9xf32, #tpu.memory_space<smem>>, %arg6: memref<2x4x256xf32, #tpu.memory_space<vmem>>, %arg7: memref<2x512xf32, #tpu.memory_space<vmem>>) attributes {dimension_semantics = [#tpu.dimension_semantics<parallel>], iteration_bounds = array<i64: 1>, scalar_prefetch = 0 : i64, scratch_operands = 1 : i64, tpu.core_type = #tpu.core_type<tc>, window_params = [{transform_indices = @transform_0, window_bounds = array<i64: 2, 4, 256>}, {pipeline_mode = #tpu.pipeline_mode<synchronous>, transform_indices = @transform_1, window_bounds = array<i64: 2, 1, 256>}, {transform_indices = @transform_2, window_bounds = array<i64: 18>}, {transform_indices = @transform_3, window_bounds = array<i64: 9>}, {transform_indices = @transform_4, window_bounds = array<i64: 9>}, {transform_indices = @transform_5, window_bounds = array<i64: 2, 4, 256>}]} {
    %c0 = arith.constant 0 : index
    %c0_0 = arith.constant 0 : index
    %c0_1 = arith.constant 0 : index
    %0 = vector.load %arg1[%c0, %c0_0, %c0_1] : memref<2x4x256xf32, #tpu.memory_space<vmem>>, vector<2x4x256xf32>
    %cst = arith.constant dense<0.000000e+00> : vector<2x256xf32>
    %1 = vector.multi_reduction <add>, %0, %cst [1] : vector<2x4x256xf32> to vector<2x256xf32>
    %cst_2 = arith.constant 4.000000e+00 : f32
    %2 = vector.broadcast %cst_2 : f32 to vector<2x256xf32>
    %3 = arith.divf %1, %2 : vector<2x256xf32>
    %cst_3 = arith.constant dense<0xFF800000> : vector<2x256xf32>
    %4 = vector.multi_reduction <maximumf>, %0, %cst_3 [1] : vector<2x4x256xf32> to vector<2x256xf32>
    %cst_4 = arith.constant 0.000000e+00 : f32
    %5 = vector.broadcast %cst_4 : f32 to vector<2x512xf32>
    %c0_5 = arith.constant 0 : index
    %c0_6 = arith.constant 0 : index
    %6 = vector.load %arg7[%c0_5, %c0_6] : memref<2x512xf32, #tpu.memory_space<vmem>>, vector<2x512xf32>
    tpu.vector_store %arg7[%c0_5, %c0_6], %5 {strides = array<i32>} : memref<2x512xf32, #tpu.memory_space<vmem>>, vector<2x512xf32>,
    %c0_7 = arith.constant 0 : index
    %c0_8 = arith.constant 0 : index
    %c0_9 = arith.constant 0 : index
    %7 = vector.load %arg2[%c0_7, %c0_8, %c0_9] : memref<2x1x256xf32, #tpu.memory_space<vmem>>, vector<1x1x256xf32>
    %8 = vector.shape_cast %7 : vector<1x1x256xf32> to vector<1x256xf32>
    %c1 = arith.constant 1 : index
    %c0_10 = arith.constant 0 : index
    %c0_11 = arith.constant 0 : index
    %9 = vector.load %arg2[%c1, %c0_10, %c0_11] : memref<2x1x256xf32, #tpu.memory_space<vmem>>, vector<1x1x256xf32>
    %10 = vector.shape_cast %9 : vector<1x1x256xf32> to vector<1x256xf32>
    %cst_12 = arith.constant 0.000000e+00 : f32
    %11 = vector.broadcast %cst_12 : f32 to vector<2x256xf32>
    %c0_13 = arith.constant 0 : index
    %c128 = arith.constant 128 : index
    %12 = vector.load %arg7[%c0_13, %c128] : memref<2x512xf32, #tpu.memory_space<vmem>>, vector<2x256xf32>
    tpu.vector_store %arg7[%c0_13, %c128], %3 {strides = array<i32>} : memref<2x512xf32, #tpu.memory_space<vmem>>, vector<2x256xf32>,
    %c0_14 = arith.constant 0 : index
    %13 = memref.load %arg3[%c0_14] : memref<18xf32, #tpu.memory_space<smem>>
    %c0_15 = arith.constant 0 : index
    %c111 = arith.constant 111 : index
    %14 = vector.load %arg7[%c0_15, %c111] : memref<2x512xf32, #tpu.memory_space<vmem>>, vector<2x256xf32>
    %15 = vector.broadcast %8 : vector<1x256xf32> to vector<2x256xf32>
    %16 = arith.mulf %14, %15 : vector<2x256xf32>
    %17 = vector.broadcast %13 : f32 to vector<2x256xf32>
    %18 = arith.mulf %17, %16 : vector<2x256xf32>
    %19 = arith.addf %11, %18 : vector<2x256xf32>
    %c1_16 = arith.constant 1 : index
    %20 = memref.load %arg3[%c1_16] : memref<18xf32, #tpu.memory_space<smem>>
    %c0_17 = arith.constant 0 : index
    %c112 = arith.constant 112 : index
    %21 = vector.load %arg7[%c0_17, %c112] : memref<2x512xf32, #tpu.memory_space<vmem>>, vector<2x256xf32>
    %22 = vector.broadcast %20 : f32 to vector<2x256xf32>
    %23 = arith.mulf %22, %21 : vector<2x256xf32>
    %24 = arith.addf %19, %23 : vector<2x256xf32>
    %c2 = arith.constant 2 : index
    %25 = memref.load %arg3[%c2] : memref<18xf32, #tpu.memory_space<smem>>
    %c0_18 = arith.constant 0 : index
    %c113 = arith.constant 113 : index
    %26 = vector.load %arg7[%c0_18, %c113] : memref<2x512xf32, #tpu.memory_space<vmem>>, vector<2x256xf32>
    %27 = vector.broadcast %10 : vector<1x256xf32> to vector<2x256xf32>
    %28 = arith.mulf %26, %27 : vector<2x256xf32>
    %29 = vector.broadcast %25 : f32 to vector<2x256xf32>
    %30 = arith.mulf %29, %28 : vector<2x256xf32>
    %31 = arith.addf %24, %30 : vector<2x256xf32>
    %c3 = arith.constant 3 : index
    %32 = memref.load %arg3[%c3] : memref<18xf32, #tpu.memory_space<smem>>
    %c0_19 = arith.constant 0 : index
    %c127 = arith.constant 127 : index
    %33 = vector.load %arg7[%c0_19, %c127] : memref<2x512xf32, #tpu.memory_space<vmem>>, vector<2x256xf32>
    %34 = vector.broadcast %8 : vector<1x256xf32> to vector<2x256xf32>
    %35 = arith.mulf %33, %34 : vector<2x256xf32>
    %36 = vector.broadcast %32 : f32 to vector<2x256xf32>
    %37 = arith.mulf %36, %35 : vector<2x256xf32>
    %38 = arith.addf %31, %37 : vector<2x256xf32>
    %c4 = arith.constant 4 : index
    %39 = memref.load %arg3[%c4] : memref<18xf32, #tpu.memory_space<smem>>
    %c0_20 = arith.constant 0 : index
    %c128_21 = arith.constant 128 : index
    %40 = vector.load %arg7[%c0_20, %c128_21] : memref<2x512xf32, #tpu.memory_space<vmem>>, vector<2x256xf32>
    %41 = vector.broadcast %39 : f32 to vector<2x256xf32>
    %42 = arith.mulf %41, %40 : vector<2x256xf32>
    %43 = arith.addf %38, %42 : vector<2x256xf32>
    %c5 = arith.constant 5 : index
    %44 = memref.load %arg3[%c5] : memref<18xf32, #tpu.memory_space<smem>>
    %c0_22 = arith.constant 0 : index
    %c129 = arith.constant 129 : index
    %45 = vector.load %arg7[%c0_22, %c129] : memref<2x512xf32, #tpu.memory_space<vmem>>, vector<2x256xf32>
    %46 = vector.broadcast %10 : vector<1x256xf32> to vector<2x256xf32>
    %47 = arith.mulf %45, %46 : vector<2x256xf32>
    %48 = vector.broadcast %44 : f32 to vector<2x256xf32>
    %49 = arith.mulf %48, %47 : vector<2x256xf32>
    %50 = arith.addf %43, %49 : vector<2x256xf32>
    %c6 = arith.constant 6 : index
    %51 = memref.load %arg3[%c6] : memref<18xf32, #tpu.memory_space<smem>>
    %c0_23 = arith.constant 0 : index
    %c143 = arith.constant 143 : index
    %52 = vector.load %arg7[%c0_23, %c143] : memref<2x512xf32, #tpu.memory_space<vmem>>, vector<2x256xf32>
    %53 = vector.broadcast %8 : vector<1x256xf32> to vector<2x256xf32>
    %54 = arith.mulf %52, %53 : vector<2x256xf32>
    %55 = vector.broadcast %51 : f32 to vector<2x256xf32>
    %56 = arith.mulf %55, %54 : vector<2x256xf32>
    %57 = arith.addf %50, %56 : vector<2x256xf32>
    %c7 = arith.constant 7 : index
    %58 = memref.load %arg3[%c7] : memref<18xf32, #tpu.memory_space<smem>>
    %c0_24 = arith.constant 0 : index
    %c144 = arith.constant 144 : index
    %59 = vector.load %arg7[%c0_24, %c144] : memref<2x512xf32, #tpu.memory_space<vmem>>, vector<2x256xf32>
    %60 = vector.broadcast %58 : f32 to vector<2x256xf32>
    %61 = arith.mulf %60, %59 : vector<2x256xf32>
    %62 = arith.addf %57, %61 : vector<2x256xf32>
    %c8 = arith.constant 8 : index
    %63 = memref.load %arg3[%c8] : memref<18xf32, #tpu.memory_space<smem>>
    %c0_25 = arith.constant 0 : index
    %c145 = arith.constant 145 : index
    %64 = vector.load %arg7[%c0_25, %c145] : memref<2x512xf32, #tpu.memory_space<vmem>>, vector<2x256xf32>
    %65 = vector.broadcast %10 : vector<1x256xf32> to vector<2x256xf32>
    %66 = arith.mulf %64, %65 : vector<2x256xf32>
    %67 = vector.broadcast %63 : f32 to vector<2x256xf32>
    %68 = arith.mulf %67, %66 : vector<2x256xf32>
    %69 = arith.addf %62, %68 : vector<2x256xf32>
    %c0_26 = arith.constant 0 : index
    %c128_27 = arith.constant 128 : index
    %70 = vector.load %arg7[%c0_26, %c128_27] : memref<2x512xf32, #tpu.memory_space<vmem>>, vector<2x256xf32>
    tpu.vector_store %arg7[%c0_26, %c128_27], %4 {strides = array<i32>} : memref<2x512xf32, #tpu.memory_space<vmem>>, vector<2x256xf32>,
    %c9 = arith.constant 9 : index
    %71 = memref.load %arg3[%c9] : memref<18xf32, #tpu.memory_space<smem>>
    %c0_28 = arith.constant 0 : index
    %c111_29 = arith.constant 111 : index
    %72 = vector.load %arg7[%c0_28, %c111_29] : memref<2x512xf32, #tpu.memory_space<vmem>>, vector<2x256xf32>
    %73 = vector.broadcast %8 : vector<1x256xf32> to vector<2x256xf32>
    %74 = arith.mulf %72, %73 : vector<2x256xf32>
    %75 = vector.broadcast %71 : f32 to vector<2x256xf32>
    %76 = arith.mulf %75, %74 : vector<2x256xf32>
    %77 = arith.addf %69, %76 : vector<2x256xf32>
    %c10 = arith.constant 10 : index
    %78 = memref.load %arg3[%c10] : memref<18xf32, #tpu.memory_space<smem>>
    %c0_30 = arith.constant 0 : index
    %c112_31 = arith.constant 112 : index
    %79 = vector.load %arg7[%c0_30, %c112_31] : memref<2x512xf32, #tpu.memory_space<vmem>>, vector<2x256xf32>
    %80 = vector.broadcast %78 : f32 to vector<2x256xf32>
    %81 = arith.mulf %80, %79 : vector<2x256xf32>
    %82 = arith.addf %77, %81 : vector<2x256xf32>
    %c11 = arith.constant 11 : index
    %83 = memref.load %arg3[%c11] : memref<18xf32, #tpu.memory_space<smem>>
    %c0_32 = arith.constant 0 : index
    %c113_33 = arith.constant 113 : index
    %84 = vector.load %arg7[%c0_32, %c113_33] : memref<2x512xf32, #tpu.memory_space<vmem>>, vector<2x256xf32>
    %85 = vector.broadcast %10 : vector<1x256xf32> to vector<2x256xf32>
    %86 = arith.mulf %84, %85 : vector<2x256xf32>
    %87 = vector.broadcast %83 : f32 to vector<2x256xf32>
    %88 = arith.mulf %87, %86 : vector<2x256xf32>
    %89 = arith.addf %82, %88 : vector<2x256xf32>
    %c12 = arith.constant 12 : index
    %90 = memref.load %arg3[%c12] : memref<18xf32, #tpu.memory_space<smem>>
    %c0_34 = arith.constant 0 : index
    %c127_35 = arith.constant 127 : index
    %91 = vector.load %arg7[%c0_34, %c127_35] : memref<2x512xf32, #tpu.memory_space<vmem>>, vector<2x256xf32>
    %92 = vector.broadcast %8 : vector<1x256xf32> to vector<2x256xf32>
    %93 = arith.mulf %91, %92 : vector<2x256xf32>
    %94 = vector.broadcast %90 : f32 to vector<2x256xf32>
    %95 = arith.mulf %94, %93 : vector<2x256xf32>
    %96 = arith.addf %89, %95 : vector<2x256xf32>
    %c13 = arith.constant 13 : index
    %97 = memref.load %arg3[%c13] : memref<18xf32, #tpu.memory_space<smem>>
    %c0_36 = arith.constant 0 : index
    %c128_37 = arith.constant 128 : index
    %98 = vector.load %arg7[%c0_36, %c128_37] : memref<2x512xf32, #tpu.memory_space<vmem>>, vector<2x256xf32>
    %99 = vector.broadcast %97 : f32 to vector<2x256xf32>
    %100 = arith.mulf %99, %98 : vector<2x256xf32>
    %101 = arith.addf %96, %100 : vector<2x256xf32>
    %c14 = arith.constant 14 : index
    %102 = memref.load %arg3[%c14] : memref<18xf32, #tpu.memory_space<smem>>
    %c0_38 = arith.constant 0 : index
    %c129_39 = arith.constant 129 : index
    %103 = vector.load %arg7[%c0_38, %c129_39] : memref<2x512xf32, #tpu.memory_space<vmem>>, vector<2x256xf32>
    %104 = vector.broadcast %10 : vector<1x256xf32> to vector<2x256xf32>
    %105 = arith.mulf %103, %104 : vector<2x256xf32>
    %106 = vector.broadcast %102 : f32 to vector<2x256xf32>
    %107 = arith.mulf %106, %105 : vector<2x256xf32>
    %108 = arith.addf %101, %107 : vector<2x256xf32>
    %c15 = arith.constant 15 : index
    %109 = memref.load %arg3[%c15] : memref<18xf32, #tpu.memory_space<smem>>
    %c0_40 = arith.constant 0 : index
    %c143_41 = arith.constant 143 : index
    %110 = vector.load %arg7[%c0_40, %c143_41] : memref<2x512xf32, #tpu.memory_space<vmem>>, vector<2x256xf32>
    %111 = vector.broadcast %8 : vector<1x256xf32> to vector<2x256xf32>
    %112 = arith.mulf %110, %111 : vector<2x256xf32>
    %113 = vector.broadcast %109 : f32 to vector<2x256xf32>
    %114 = arith.mulf %113, %112 : vector<2x256xf32>
    %115 = arith.addf %108, %114 : vector<2x256xf32>
    %c16 = arith.constant 16 : index
    %116 = memref.load %arg3[%c16] : memref<18xf32, #tpu.memory_space<smem>>
    %c0_42 = arith.constant 0 : index
    %c144_43 = arith.constant 144 : index
    %117 = vector.load %arg7[%c0_42, %c144_43] : memref<2x512xf32, #tpu.memory_space<vmem>>, vector<2x256xf32>
    %118 = vector.broadcast %116 : f32 to vector<2x256xf32>
    %119 = arith.mulf %118, %117 : vector<2x256xf32>
    %120 = arith.addf %115, %119 : vector<2x256xf32>
    %c17 = arith.constant 17 : index
    %121 = memref.load %arg3[%c17] : memref<18xf32, #tpu.memory_space<smem>>
    %c0_44 = arith.constant 0 : index
    %c145_45 = arith.constant 145 : index
    %122 = vector.load %arg7[%c0_44, %c145_45] : memref<2x512xf32, #tpu.memory_space<vmem>>, vector<2x256xf32>
    %123 = vector.broadcast %10 : vector<1x256xf32> to vector<2x256xf32>
    %124 = arith.mulf %122, %123 : vector<2x256xf32>
    %125 = vector.broadcast %121 : f32 to vector<2x256xf32>
    %126 = arith.mulf %125, %124 : vector<2x256xf32>
    %127 = arith.addf %120, %126 : vector<2x256xf32>
    %c0_46 = arith.constant 0 : index
    %c128_47 = arith.constant 128 : index
    %128 = vector.load %arg7[%c0_46, %c128_47] : memref<2x512xf32, #tpu.memory_space<vmem>>, vector<2x256xf32>
    tpu.vector_store %arg7[%c0_46, %c128_47], %127 {strides = array<i32>} : memref<2x512xf32, #tpu.memory_space<vmem>>, vector<2x256xf32>,
    %c0_48 = arith.constant 0 : index
    %129 = memref.load %arg4[%c0_48] : memref<9xf32, #tpu.memory_space<smem>>
    %c0_49 = arith.constant 0 : index
    %c111_50 = arith.constant 111 : index
    %130 = vector.load %arg7[%c0_49, %c111_50] : memref<2x512xf32, #tpu.memory_space<vmem>>, vector<2x256xf32>
    %131 = vector.broadcast %8 : vector<1x256xf32> to vector<2x256xf32>
    %132 = arith.mulf %130, %131 : vector<2x256xf32>
    %133 = vector.broadcast %129 : f32 to vector<2x256xf32>
    %134 = arith.mulf %133, %132 : vector<2x256xf32>
    %135 = arith.addf %11, %134 : vector<2x256xf32>
    %c1_51 = arith.constant 1 : index
    %136 = memref.load %arg4[%c1_51] : memref<9xf32, #tpu.memory_space<smem>>
    %c0_52 = arith.constant 0 : index
    %c112_53 = arith.constant 112 : index
    %137 = vector.load %arg7[%c0_52, %c112_53] : memref<2x512xf32, #tpu.memory_space<vmem>>, vector<2x256xf32>
    %138 = vector.broadcast %136 : f32 to vector<2x256xf32>
    %139 = arith.mulf %138, %137 : vector<2x256xf32>
    %140 = arith.addf %135, %139 : vector<2x256xf32>
    %c2_54 = arith.constant 2 : index
    %141 = memref.load %arg4[%c2_54] : memref<9xf32, #tpu.memory_space<smem>>
    %c0_55 = arith.constant 0 : index
    %c113_56 = arith.constant 113 : index
    %142 = vector.load %arg7[%c0_55, %c113_56] : memref<2x512xf32, #tpu.memory_space<vmem>>, vector<2x256xf32>
    %143 = vector.broadcast %10 : vector<1x256xf32> to vector<2x256xf32>
    %144 = arith.mulf %142, %143 : vector<2x256xf32>
    %145 = vector.broadcast %141 : f32 to vector<2x256xf32>
    %146 = arith.mulf %145, %144 : vector<2x256xf32>
    %147 = arith.addf %140, %146 : vector<2x256xf32>
    %c3_57 = arith.constant 3 : index
    %148 = memref.load %arg4[%c3_57] : memref<9xf32, #tpu.memory_space<smem>>
    %c0_58 = arith.constant 0 : index
    %c127_59 = arith.constant 127 : index
    %149 = vector.load %arg7[%c0_58, %c127_59] : memref<2x512xf32, #tpu.memory_space<vmem>>, vector<2x256xf32>
    %150 = vector.broadcast %8 : vector<1x256xf32> to vector<2x256xf32>
    %151 = arith.mulf %149, %150 : vector<2x256xf32>
    %152 = vector.broadcast %148 : f32 to vector<2x256xf32>
    %153 = arith.mulf %152, %151 : vector<2x256xf32>
    %154 = arith.addf %147, %153 : vector<2x256xf32>
    %c4_60 = arith.constant 4 : index
    %155 = memref.load %arg4[%c4_60] : memref<9xf32, #tpu.memory_space<smem>>
    %c0_61 = arith.constant 0 : index
    %c128_62 = arith.constant 128 : index
    %156 = vector.load %arg7[%c0_61, %c128_62] : memref<2x512xf32, #tpu.memory_space<vmem>>, vector<2x256xf32>
    %157 = vector.broadcast %155 : f32 to vector<2x256xf32>
    %158 = arith.mulf %157, %156 : vector<2x256xf32>
    %159 = arith.addf %154, %158 : vector<2x256xf32>
    %c5_63 = arith.constant 5 : index
    %160 = memref.load %arg4[%c5_63] : memref<9xf32, #tpu.memory_space<smem>>
    %c0_64 = arith.constant 0 : index
    %c129_65 = arith.constant 129 : index
    %161 = vector.load %arg7[%c0_64, %c129_65] : memref<2x512xf32, #tpu.memory_space<vmem>>, vector<2x256xf32>
    %162 = vector.broadcast %10 : vector<1x256xf32> to vector<2x256xf32>
    %163 = arith.mulf %161, %162 : vector<2x256xf32>
    %164 = vector.broadcast %160 : f32 to vector<2x256xf32>
    %165 = arith.mulf %164, %163 : vector<2x256xf32>
    %166 = arith.addf %159, %165 : vector<2x256xf32>
    %c6_66 = arith.constant 6 : index
    %167 = memref.load %arg4[%c6_66] : memref<9xf32, #tpu.memory_space<smem>>
    %c0_67 = arith.constant 0 : index
    %c143_68 = arith.constant 143 : index
    %168 = vector.load %arg7[%c0_67, %c143_68] : memref<2x512xf32, #tpu.memory_space<vmem>>, vector<2x256xf32>
    %169 = vector.broadcast %8 : vector<1x256xf32> to vector<2x256xf32>
    %170 = arith.mulf %168, %169 : vector<2x256xf32>
    %171 = vector.broadcast %167 : f32 to vector<2x256xf32>
    %172 = arith.mulf %171, %170 : vector<2x256xf32>
    %173 = arith.addf %166, %172 : vector<2x256xf32>
    %c7_69 = arith.constant 7 : index
    %174 = memref.load %arg4[%c7_69] : memref<9xf32, #tpu.memory_space<smem>>
    %c0_70 = arith.constant 0 : index
    %c144_71 = arith.constant 144 : index
    %175 = vector.load %arg7[%c0_70, %c144_71] : memref<2x512xf32, #tpu.memory_space<vmem>>, vector<2x256xf32>
    %176 = vector.broadcast %174 : f32 to vector<2x256xf32>
    %177 = arith.mulf %176, %175 : vector<2x256xf32>
    %178 = arith.addf %173, %177 : vector<2x256xf32>
    %c8_72 = arith.constant 8 : index
    %179 = memref.load %arg4[%c8_72] : memref<9xf32, #tpu.memory_space<smem>>
    %c0_73 = arith.constant 0 : index
    %c145_74 = arith.constant 145 : index
    %180 = vector.load %arg7[%c0_73, %c145_74] : memref<2x512xf32, #tpu.memory_space<vmem>>, vector<2x256xf32>
    %181 = vector.broadcast %10 : vector<1x256xf32> to vector<2x256xf32>
    %182 = arith.mulf %180, %181 : vector<2x256xf32>
    %183 = vector.broadcast %179 : f32 to vector<2x256xf32>
    %184 = arith.mulf %183, %182 : vector<2x256xf32>
    %185 = arith.addf %178, %184 : vector<2x256xf32>
    %c0_75 = arith.constant 0 : index
    %c128_76 = arith.constant 128 : index
    %186 = vector.load %arg7[%c0_75, %c128_76] : memref<2x512xf32, #tpu.memory_space<vmem>>, vector<2x256xf32>
    tpu.vector_store %arg7[%c0_75, %c128_76], %185 {strides = array<i32>} : memref<2x512xf32, #tpu.memory_space<vmem>>, vector<2x256xf32>,
    %c0_77 = arith.constant 0 : index
    %187 = memref.load %arg5[%c0_77] : memref<9xf32, #tpu.memory_space<smem>>
    %c0_78 = arith.constant 0 : index
    %c111_79 = arith.constant 111 : index
    %188 = vector.load %arg7[%c0_78, %c111_79] : memref<2x512xf32, #tpu.memory_space<vmem>>, vector<2x256xf32>
    %189 = vector.broadcast %8 : vector<1x256xf32> to vector<2x256xf32>
    %190 = arith.mulf %188, %189 : vector<2x256xf32>
    %191 = vector.broadcast %187 : f32 to vector<2x256xf32>
    %192 = arith.mulf %191, %190 : vector<2x256xf32>
    %193 = arith.addf %11, %192 : vector<2x256xf32>
    %c1_80 = arith.constant 1 : index
    %194 = memref.load %arg5[%c1_80] : memref<9xf32, #tpu.memory_space<smem>>
    %c0_81 = arith.constant 0 : index
    %c112_82 = arith.constant 112 : index
    %195 = vector.load %arg7[%c0_81, %c112_82] : memref<2x512xf32, #tpu.memory_space<vmem>>, vector<2x256xf32>
    %196 = vector.broadcast %194 : f32 to vector<2x256xf32>
    %197 = arith.mulf %196, %195 : vector<2x256xf32>
    %198 = arith.addf %193, %197 : vector<2x256xf32>
    %c2_83 = arith.constant 2 : index
    %199 = memref.load %arg5[%c2_83] : memref<9xf32, #tpu.memory_space<smem>>
    %c0_84 = arith.constant 0 : index
    %c113_85 = arith.constant 113 : index
    %200 = vector.load %arg7[%c0_84, %c113_85] : memref<2x512xf32, #tpu.memory_space<vmem>>, vector<2x256xf32>
    %201 = vector.broadcast %10 : vector<1x256xf32> to vector<2x256xf32>
    %202 = arith.mulf %200, %201 : vector<2x256xf32>
    %203 = vector.broadcast %199 : f32 to vector<2x256xf32>
    %204 = arith.mulf %203, %202 : vector<2x256xf32>
    %205 = arith.addf %198, %204 : vector<2x256xf32>
    %c3_86 = arith.constant 3 : index
    %206 = memref.load %arg5[%c3_86] : memref<9xf32, #tpu.memory_space<smem>>
    %c0_87 = arith.constant 0 : index
    %c127_88 = arith.constant 127 : index
    %207 = vector.load %arg7[%c0_87, %c127_88] : memref<2x512xf32, #tpu.memory_space<vmem>>, vector<2x256xf32>
    %208 = vector.broadcast %8 : vector<1x256xf32> to vector<2x256xf32>
    %209 = arith.mulf %207, %208 : vector<2x256xf32>
    %210 = vector.broadcast %206 : f32 to vector<2x256xf32>
    %211 = arith.mulf %210, %209 : vector<2x256xf32>
    %212 = arith.addf %205, %211 : vector<2x256xf32>
    %c4_89 = arith.constant 4 : index
    %213 = memref.load %arg5[%c4_89] : memref<9xf32, #tpu.memory_space<smem>>
    %c0_90 = arith.constant 0 : index
    %c128_91 = arith.constant 128 : index
    %214 = vector.load %arg7[%c0_90, %c128_91] : memref<2x512xf32, #tpu.memory_space<vmem>>, vector<2x256xf32>
    %215 = vector.broadcast %213 : f32 to vector<2x256xf32>
    %216 = arith.mulf %215, %214 : vector<2x256xf32>
    %217 = arith.addf %212, %216 : vector<2x256xf32>
    %c5_92 = arith.constant 5 : index
    %218 = memref.load %arg5[%c5_92] : memref<9xf32, #tpu.memory_space<smem>>
    %c0_93 = arith.constant 0 : index
    %c129_94 = arith.constant 129 : index
    %219 = vector.load %arg7[%c0_93, %c129_94] : memref<2x512xf32, #tpu.memory_space<vmem>>, vector<2x256xf32>
    %220 = vector.broadcast %10 : vector<1x256xf32> to vector<2x256xf32>
    %221 = arith.mulf %219, %220 : vector<2x256xf32>
    %222 = vector.broadcast %218 : f32 to vector<2x256xf32>
    %223 = arith.mulf %222, %221 : vector<2x256xf32>
    %224 = arith.addf %217, %223 : vector<2x256xf32>
    %c6_95 = arith.constant 6 : index
    %225 = memref.load %arg5[%c6_95] : memref<9xf32, #tpu.memory_space<smem>>
    %c0_96 = arith.constant 0 : index
    %c143_97 = arith.constant 143 : index
    %226 = vector.load %arg7[%c0_96, %c143_97] : memref<2x512xf32, #tpu.memory_space<vmem>>, vector<2x256xf32>
    %227 = vector.broadcast %8 : vector<1x256xf32> to vector<2x256xf32>
    %228 = arith.mulf %226, %227 : vector<2x256xf32>
    %229 = vector.broadcast %225 : f32 to vector<2x256xf32>
    %230 = arith.mulf %229, %228 : vector<2x256xf32>
    %231 = arith.addf %224, %230 : vector<2x256xf32>
    %c7_98 = arith.constant 7 : index
    %232 = memref.load %arg5[%c7_98] : memref<9xf32, #tpu.memory_space<smem>>
    %c0_99 = arith.constant 0 : index
    %c144_100 = arith.constant 144 : index
    %233 = vector.load %arg7[%c0_99, %c144_100] : memref<2x512xf32, #tpu.memory_space<vmem>>, vector<2x256xf32>
    %234 = vector.broadcast %232 : f32 to vector<2x256xf32>
    %235 = arith.mulf %234, %233 : vector<2x256xf32>
    %236 = arith.addf %231, %235 : vector<2x256xf32>
    %c8_101 = arith.constant 8 : index
    %237 = memref.load %arg5[%c8_101] : memref<9xf32, #tpu.memory_space<smem>>
    %c0_102 = arith.constant 0 : index
    %c145_103 = arith.constant 145 : index
    %238 = vector.load %arg7[%c0_102, %c145_103] : memref<2x512xf32, #tpu.memory_space<vmem>>, vector<2x256xf32>
    %239 = vector.broadcast %10 : vector<1x256xf32> to vector<2x256xf32>
    %240 = arith.mulf %238, %239 : vector<2x256xf32>
    %241 = vector.broadcast %237 : f32 to vector<2x256xf32>
    %242 = arith.mulf %241, %240 : vector<2x256xf32>
    %243 = arith.addf %236, %242 : vector<2x256xf32>
    %244 = arith.negf %243 : vector<2x256xf32>
    %245 = math.exp %244 : vector<2x256xf32>
    %cst_104 = arith.constant 1.000000e+00 : f32
    %246 = vector.broadcast %cst_104 : f32 to vector<2x256xf32>
    %247 = arith.addf %246, %245 : vector<2x256xf32>
    %248 = arith.divf %246, %247 : vector<2x256xf32>
    %249 = vector.shape_cast %248 : vector<2x256xf32> to vector<2x1x256xf32>
    %250 = vector.broadcast %249 : vector<2x1x256xf32> to vector<2x4x256xf32>
    %251 = arith.mulf %0, %250 : vector<2x4x256xf32>
    %c0_105 = arith.constant 0 : index
    %c0_106 = arith.constant 0 : index
    %c0_107 = arith.constant 0 : index
    %252 = vector.load %arg6[%c0_105, %c0_106, %c0_107] : memref<2x4x256xf32, #tpu.memory_space<vmem>>, vector<2x4x256xf32>
    tpu.vector_store %arg6[%c0_105, %c0_106, %c0_107], %251 {strides = array<i32>} : memref<2x4x256xf32, #tpu.memory_space<vmem>>, vector<2x4x256xf32>,
    return
  }
  func.func @transform_0(%arg0: i32) -> (i32, i32, i32) {
    %c0_i32 = arith.constant 0 : i32
    %c0_i32_0 = arith.constant 0 : i32
    %c0_i32_1 = arith.constant 0 : i32
    return %arg0, %c0_i32, %c0_i32_0 : i32, i32, i32
  }
  func.func @transform_1(%arg0: i32) -> (i32, i32, i32) {
    %c0_i32 = arith.constant 0 : i32
    %c0_i32_0 = arith.constant 0 : i32
    %c0_i32_1 = arith.constant 0 : i32
    %c0_i32_2 = arith.constant 0 : i32
    return %c0_i32, %c0_i32_0, %c0_i32_1 : i32, i32, i32
  }
  func.func @transform_2(%arg0: i32) -> i32 {
    %c0_i32 = arith.constant 0 : i32
    %c0_i32_0 = arith.constant 0 : i32
    return %c0_i32 : i32
  }
  func.func @transform_3(%arg0: i32) -> i32 {
    %c0_i32 = arith.constant 0 : i32
    %c0_i32_0 = arith.constant 0 : i32
    return %c0_i32 : i32
  }
  func.func @transform_4(%arg0: i32) -> i32 {
    %c0_i32 = arith.constant 0 : i32
    %c0_i32_0 = arith.constant 0 : i32
    return %c0_i32 : i32
  }
  func.func @transform_5(%arg0: i32) -> (i32, i32, i32) {
    %c0_i32 = arith.constant 0 : i32
    %c0_i32_0 = arith.constant 0 : i32
    %c0_i32_1 = arith.constant 0 : i32
    return %arg0, %c0_i32, %c0_i32_0 : i32, i32, i32
  }
}

</mosaic_0001>

<llo_original>
// kernel: tpu_custom_call.1
$region0: #{tpu_custom_call.1}
  #allocation0 [shape = 'u32[]', space=smem, size = 0x4, offset = 0x4, fixed_abs, tag = 'smem constant byte address 0x4 - core index']
  #allocation1 [shape = 'u32[144,128]{1,0:T(1,128)}', space=vmem, size = 0x12000, scoped, tag = 'internal scratch']
  #allocation2 [shape = 'f32[2,512]{1,0:T(2,128)}', space=vmem, size = 0x1000, scoped, tag = 'scratch operand']
  %s0 = inlined_call_operand.hbm [shape: f32[2,4,256], index: 0, kind: input, shape index: {}]
  %s1 = inlined_call_operand.hbm [shape: f32[2,1,256], index: 1, kind: input, shape index: {}]
  %s2 = inlined_call_operand.vmem [shape: f32[18], index: 2, kind: input, shape index: {}]
  %s3 = inlined_call_operand.vmem [shape: f32[9], index: 3, kind: input, shape index: {}]
  %s4 = inlined_call_operand.vmem [shape: f32[9], index: 4, kind: input, shape index: {}]
  %s5 = inlined_call_operand.hbm [shape: f32[2,4,256], index: 5, kind: output, shape index: {}]
  %s6 = sld [smem:[#allocation0]]
  $region50: #{tpu_custom_call.1} parent=0
    _
  %s8 = ssub.s32 1, %s6
  %s9 = scalar_select 0, %s8, %s6
  $region1: #{tpu_custom_call.1} parent=0
    #allocation3 [shape = 'u8[8192]{0}', space=vmem, size = 0x2000, scoped, tag = 'input window, operand 0, single buffered']
    #allocation4 [shape = 's32[1]{0}', space=sflag, size = 0x4, scoped, tag = 'scoped memory for tpu_custom_call.1']
    #allocation5 [shape = 's32[1]{0}', space=sflag, size = 0x4, scoped, tag = 'scoped memory for tpu_custom_call.1']
    #allocation6 [shape = 's32[1]{0}', space=sflag, size = 0x4, scoped, tag = 'scoped memory for tpu_custom_call.1']
    #allocation7 [shape = 'u8[2048]{0}', space=vmem, size = 0x800, scoped, tag = 'input window, operand 1, single buffered']
    #allocation8 [shape = 's32[1]{0}', space=sflag, size = 0x4, scoped, tag = 'scoped memory for tpu_custom_call.1']
    #allocation9 [shape = 'u8[512]{0}', space=smem, size = 0x200, scoped, tag = 'input window, operand 2, single buffered']
    #allocation10 [shape = 'u8[512]{0}', space=smem, size = 0x200, scoped, tag = 'input window, operand 3, single buffered']
    #allocation11 [shape = 's32[1]{0}', space=sflag, size = 0x4, scoped, tag = 'scoped memory for tpu_custom_call.1']
    #allocation12 [shape = 'u8[512]{0}', space=smem, size = 0x200, scoped, tag = 'input window, operand 4, single buffered']
    #allocation13 [shape = 'u8[8192]{0}', space=vmem, size = 0x2000, scoped, tag = 'output window, operand 0, single buffered']
    %10 = vsyncpa [#allocation4], 0
    %11 = vsyncpa [#allocation8], 0
    %12 = vsyncpa [#allocation6], 0
    %13 = vsyncpa [#allocation11], 0
    %14 = vsyncpa [#allocation5], 0
    // Predicated region
    $region2: #{tpu_custom_call.1} parent=1 // pred_check
      _
    $region3: #{tpu_custom_call.1} parent=1 // pred_check_branch
      %16 = sbr.rel (0) target = $region5
    $region4: #{tpu_custom_call.1} parent=1 // pred_region
      %s18 = ssub.s32 256, 256
      %19 = vsyncadd [#allocation4], %s18
      %s20 = sshll.u32 [#allocation3], 4
      %s21 = int_to_ptr.vmem [resolvable:$true] %s20
      %26 = dma.hbm_to_vmem [thread:$0]  %s0, 256, %s21, [#allocation4], 128, 128, 8
    $region5: #{tpu_custom_call.1} parent=1 // pred_fallthru
      _
    // Predicated region
    $region6: #{tpu_custom_call.1} parent=1 // pred_check
      _
    $region7: #{tpu_custom_call.1} parent=1 // pred_check_branch
      %28 = sbr.rel (0) target = $region9
    $region8: #{tpu_custom_call.1} parent=1 // pred_region
      %s30 = ssub.s32 64, 64
      %31 = vsyncadd [#allocation8], %s30
      %s32 = sshll.u32 [#allocation7], 4
      %s33 = int_to_ptr.vmem [resolvable:$true] %s32
      %38 = dma.hbm_to_vmem [thread:$0]  %s1, 64, %s33, [#allocation8], 32, 32, 2
    $region9: #{tpu_custom_call.1} parent=1 // pred_fallthru
      _
    // Predicated region
    $region10: #{tpu_custom_call.1} parent=1 // pred_check
      _
    $region11: #{tpu_custom_call.1} parent=1 // pred_check_branch
      %40 = sbr.rel (0) target = $region13
    $region12: #{tpu_custom_call.1} parent=1 // pred_region
      %s42 = ssub.s32 16, 16
      %43 = vsyncadd [#allocation6], %s42
      %s45 = sshll.u32 %s2, 4
      %s46 = int_to_ptr.vmem [resolvable:$true] %s45
      %48 = dma.vmem_to_smem %s46, 16, [#allocation9], [#allocation6]
    $region13: #{tpu_custom_call.1} parent=1 // pred_fallthru
      _
    // Predicated region
    $region14: #{tpu_custom_call.1} parent=1 // pred_check
      _
    $region15: #{tpu_custom_call.1} parent=1 // pred_check_branch
      %50 = sbr.rel (0) target = $region17
    $region16: #{tpu_custom_call.1} parent=1 // pred_region
      %s52 = ssub.s32 16, 16
      %53 = vsyncadd [#allocation11], %s52
      %s55 = sshll.u32 %s3, 4
      %s56 = int_to_ptr.vmem [resolvable:$true] %s55
      %58 = dma.vmem_to_smem %s56, 16, [#allocation10], [#allocation11]
    $region17: #{tpu_custom_call.1} parent=1 // pred_fallthru
      _
    // Predicated region
    $region18: #{tpu_custom_call.1} parent=1 // pred_check
      _
    $region19: #{tpu_custom_call.1} parent=1 // pred_check_branch
      %60 = sbr.rel (0) target = $region21
    $region20: #{tpu_custom_call.1} parent=1 // pred_region
      %s62 = ssub.s32 16, 16
      %63 = vsyncadd [#allocation11], %s62
      %s65 = sshll.u32 %s4, 4
      %s66 = int_to_ptr.vmem [resolvable:$true] %s65
      %68 = dma.vmem_to_smem %s66, 16, [#allocation12], [#allocation11]
    $region21: #{tpu_custom_call.1} parent=1 // pred_fallthru
      _
    // Predicated region
    $region22: #{tpu_custom_call.1} parent=1 // pred_check
      _
    $region23: #{tpu_custom_call.1} parent=1 // pred_check_branch
      %70 = sbr.rel (0) target = $region25
    $region24: #{tpu_custom_call.1} parent=1 // pred_region
      %71 = dma.done [#allocation4], 256
    $region25: #{tpu_custom_call.1} parent=1 // pred_fallthru
      _
    // Predicated region
    $region26: #{tpu_custom_call.1} parent=1 // pred_check
      _
    $region27: #{tpu_custom_call.1} parent=1 // pred_check_branch
      %73 = sbr.rel (0) target = $region29
    $region28: #{tpu_custom_call.1} parent=1 // pred_region
      %74 = dma.done [#allocation8], 64
    $region29: #{tpu_custom_call.1} parent=1 // pred_fallthru
      _
    // Predicated region
    $region30: #{tpu_custom_call.1} parent=1 // pred_check
      _
    $region31: #{tpu_custom_call.1} parent=1 // pred_check_branch
      %76 = sbr.rel (0) target = $region33
    $region32: #{tpu_custom_call.1} parent=1 // pred_region
      %77 = dma.done [#allocation6], 16
    $region33: #{tpu_custom_call.1} parent=1 // pred_fallthru
      _
    // Predicated region
    $region34: #{tpu_custom_call.1} parent=1 // pred_check
      _
    $region35: #{tpu_custom_call.1} parent=1 // pred_check_branch
      %79 = sbr.rel (0) target = $region37
    $region36: #{tpu_custom_call.1} parent=1 // pred_region
      %80 = dma.done [#allocation11], 16
    $region37: #{tpu_custom_call.1} parent=1 // pred_fallthru
      _
    // Predicated region
    $region38: #{tpu_custom_call.1} parent=1 // pred_check
      _
    $region39: #{tpu_custom_call.1} parent=1 // pred_check_branch
      %82 = sbr.rel (0) target = $region41
    $region40: #{tpu_custom_call.1} parent=1 // pred_region
      %83 = dma.done [#allocation11], 16
    $region41: #{tpu_custom_call.1} parent=1 // pred_fallthru
      _
    %84 = sfence
    %v85 = vld [vmem:[#allocation3] sm:$0xff]
    %v86 = vld [vmem:[#allocation3 + $0x8] sm:$0xff]
    %v89 = vcombine.high %v85, %v85
    %v90 = vcombine.high %v86, %v86
    %vm93 = vcmask 1043456
    %v94 = vsel %vm93, %v85, 0.0
    %v95 = vrot.slane %v94, 4
    %v96 = vadd.f32 %v94, %v95
    %v97 = vrot.slane %v96, 2
    %v98 = vadd.f32 %v96, %v97
    %v99 = vrot.slane %v98, 1
    %v100 = vadd.f32 %v98, %v99
    %v101 = vsel %vm93, %v89, 0.0
    %v102 = vrot.slane %v101, 4
    %v103 = vadd.f32 %v101, %v102
    %v104 = vrot.slane %v103, 2
    %v105 = vadd.f32 %v103, %v104
    %v106 = vrot.slane %v105, 1
    %v107 = vadd.f32 %v105, %v106
    %v108 = vsel %vm93, %v86, 0.0
    %v109 = vrot.slane %v108, 4
    %v110 = vadd.f32 %v108, %v109
    %v111 = vrot.slane %v110, 2
    %v112 = vadd.f32 %v110, %v111
    %v113 = vrot.slane %v112, 1
    %v114 = vadd.f32 %v112, %v113
    %v115 = vsel %vm93, %v90, 0.0
    %v116 = vrot.slane %v115, 4
    %v117 = vadd.f32 %v115, %v116
    %v118 = vrot.slane %v117, 2
    %v119 = vadd.f32 %v117, %v118
    %v120 = vrot.slane %v119, 1
    %v121 = vadd.f32 %v119, %v120
    %v122 = vrcp.pop 4.0
    %v123 = vmul.f32 %v100, %v122
    %v124 = vmul.f32 %v107, %v122
    %v125 = vmul.f32 %v114, %v122
    %v126 = vmul.f32 %v121, %v122
    %v127 = vsel %vm93, %v85, -inf
    %v128 = vrot.slane %v127, 4
    %v129 = vmax.f32 %v127, %v128
    %v130 = vrot.slane %v129, 2
    %v131 = vmax.f32 %v129, %v130
    %v132 = vrot.slane %v131, 1
    %v133 = vmax.f32 %v131, %v132
    %v134 = vsel %vm93, %v89, -inf
    %v135 = vrot.slane %v134, 4
    %v136 = vmax.f32 %v134, %v135
    %v137 = vrot.slane %v136, 2
    %v138 = vmax.f32 %v136, %v137
    %v139 = vrot.slane %v138, 1
    %v140 = vmax.f32 %v138, %v139
    %v141 = vsel %vm93, %v86, -inf
    %v142 = vrot.slane %v141, 4
    %v143 = vmax.f32 %v141, %v142
    %v144 = vrot.slane %v143, 2
    %v145 = vmax.f32 %v143, %v144
    %v146 = vrot.slane %v145, 1
    %v147 = vmax.f32 %v145, %v146
    %v148 = vsel %vm93, %v90, -inf
    %v149 = vrot.slane %v148, 4
    %v150 = vmax.f32 %v148, %v149
    %v151 = vrot.slane %v150, 2
    %v152 = vmax.f32 %v150, %v151
    %v153 = vrot.slane %v152, 1
    %v154 = vmax.f32 %v152, %v153
    %155 = vst [vmem:[#allocation2] sm:$0xff] 0.0
    %v156 = vld [vmem:[#allocation7] sm:$0x3]
    %s157 = scalar_lea.vmem [#allocation7], 2
    %v158 = vld [vmem:[%s157] sm:$0x3]
    %v163 = vcombine.low %v123, %v124
    %v165 = vunpack.c.l.s4 1983009808
    %v166 = vunpack.c.0.s8 %v165
    %v167 = vlaneseq
    %v168 = vshrl.u32 %v167, 7
    %v169 = vsub.s32 %v166, %v168
    %v170 = vrot.slane %v163, %v169
    %v171 = vcombine.low %v125, %v126
    %v173 = vunpack.c.l.s4 1983009808
    %v174 = vunpack.c.0.s8 %v173
    %v175 = vlaneseq
    %v176 = vshrl.u32 %v175, 7
    %v177 = vsub.s32 %v174, %v176
    %v178 = vrot.slane %v171, %v177
    %vm179 = vcmask 1044484
    %v180 = vsel %vm179, %v170, %v170
    %vm181 = vcmask 1046534
    %v182 = vsel %vm181, %v170, %v180
    %v183 = vrot.slane %v178, 7
    %vm184 = vcmask 1041409
    %v185 = vsel %vm184, %v183, %v182
    %vm186 = vcmask 1043459
    %v187 = vsel %vm186, %v183, %v185
    %vm188 = vcmask 1045509
    %v189 = vsel %vm188, %v183, %v187
    %vm190 = vcmask 1047559
    %v191 = vsel %vm190, %v183, %v189
    %193 = vst [vmem:[#allocation2 + $0x2] sm:$0xf] %v191
    %s194 = sld [smem:[#allocation9]]
    %v195 = vld [vmem:[#allocation2] sm:$0x3f]
    %v197 = vlaneseq
    %v198 = vshrl.u32 %v197, 7
    %v199 = vsub.s32 0, %v198
    %v200 = vrot.slane %v156, %v199
    %v201 = vlaneseq
    %v202 = vshrl.u32 %v201, 7
    %v203 = vsub.s32 1, %v202
    %v204 = vrot.slane %v156, %v203
    %v205 = vcombine.low %v200, %v204
    %v207 = vunpack.c.l.s4 1983009808
    %v208 = vunpack.c.0.s8 %v207
    %v209 = vlaneseq
    %v210 = vshrl.u32 %v209, 7
    %v211 = vsub.s32 %v208, %v210
    %v212 = vrot.slane %v205, %v211
    %213 = vrot.lane.b32.xlu0 %v212, 111
    %v214 = vpop.permute.xlu0 %213
    %v215 = vrot.slane %v214, 6
    %vm216 = vcmask 908288
    %v217 = vsel %vm216, %v215, %v214
    %v219 = vmul.f32 %v195, %v217
    %v220 = vstv %s194
    %v221 = vmul.f32 %v220, %v219
    %v222 = vadd.f32 %v221, 0.0
    %s223 = sld [smem:[#allocation9 + $0x1]]
    %v224 = vld [vmem:[#allocation2] sm:$0x3f]
    %v225 = vstv %s223
    %v226 = vmul.f32 %v225, %v224
    %228 = vrot.lane.b32.xlu0 %v226, 127
    %v229 = vpop.permute.xlu0 %228
    %v230 = vrot.slane %v229, 2
    %vm231 = vcmask 1039360
    %v232 = vsel %vm231, %v229, %v230
    %v234 = vadd.f32 %v222, %v232
    %s235 = sld [smem:[#allocation9 + $0x2]]
    %v237 = vlaneseq
    %v238 = vshrl.u32 %v237, 7
    %v239 = vsub.s32 0, %v238
    %v240 = vrot.slane %v158, %v239
    %v241 = vlaneseq
    %v242 = vshrl.u32 %v241, 7
    %v243 = vsub.s32 1, %v242
    %v244 = vrot.slane %v158, %v243
    %v245 = vcombine.low %v240, %v244
    %v247 = vunpack.c.l.s4 1983009808
    %v248 = vunpack.c.0.s8 %v247
    %v249 = vlaneseq
    %v250 = vshrl.u32 %v249, 7
    %v251 = vsub.s32 %v248, %v250
    %v252 = vrot.slane %v245, %v251
    %253 = vrot.lane.b32.xlu0 %v252, 113
    %v254 = vpop.permute.xlu0 %253
    %v255 = vrot.slane %v254, 6
    %vm256 = vcmask 924672
    %v257 = vsel %vm256, %v255, %v254
    %v259 = vmul.f32 %v224, %v257
    %v260 = vstv %s235
    %v261 = vmul.f32 %v260, %v259
    %263 = vrot.lane.b32.xlu0 %v261, 126
    %v264 = vpop.permute.xlu0 %263
    %v265 = vrot.slane %v264, 2
    %vm266 = vcmask 1031168
    %v267 = vsel %vm266, %v264, %v265
    %v269 = vadd.f32 %v234, %v267
    %s270 = sld [smem:[#allocation9 + $0x3]]
    %v271 = vld [vmem:[#allocation2] sm:$0x3f]
    %272 = vrot.lane.b32.xlu0 %v212, 127
    %v273 = vpop.permute.xlu0 %272
    %v274 = vrot.slane %v273, 6
    %v275 = vsel %vm231, %v274, %v273
    %v277 = vmul.f32 %v271, %v275
    %v278 = vstv %s270
    %v279 = vmul.f32 %v278, %v277
    %281 = vrot.lane.b32.xlu0 %v279, 112
    %v282 = vpop.permute.xlu0 %281
    %v283 = vrot.slane %v282, 2
    %vm284 = vcmask 916480
    %v285 = vsel %vm284, %v282, %v283
    %v287 = vadd.f32 %v269, %v285
    %s288 = sld [smem:[#allocation9 + $0x4]]
    %v289 = vld [vmem:[#allocation2 + $0x2] sm:$0xf]
    %v290 = vstv %s288
    %v291 = vmul.f32 %v290, %v289
    %293 = vrot.lane.b32.xlu0 %v291, 111
    %v294 = vpop.permute.xlu0 %293
    %v295 = vrot.slane %v294, 6
    %v296 = vsel %vm216, %v295, %v294
    %v298 = vadd.f32 %v287, %v296
    %s299 = sld [smem:[#allocation9 + $0x5]]
    %v300 = vld [vmem:[#allocation2 + $0x2] sm:$0x3f]
    %301 = vrot.lane.b32.xlu0 %v252, 1
    %v302 = vpop.permute.xlu0 %301
    %v303 = vrot.slane %v302, 6
    %vm304 = vcmask 7168
    %v305 = vsel %vm304, %v303, %v302
    %v307 = vmul.f32 %v300, %v305
    %v308 = vstv %s299
    %v309 = vmul.f32 %v308, %v307
    %311 = vrot.lane.b32.xlu0 %v309, 110
    %v312 = vpop.permute.xlu0 %311
    %v313 = vrot.slane %v312, 6
    %vm314 = vcmask 900096
    %v315 = vsel %vm314, %v313, %v312
    %v317 = vadd.f32 %v298, %v315
    %s318 = sld [smem:[#allocation9 + $0x6]]
    %v319 = vld [vmem:[#allocation2 + $0x2] sm:$0x3f]
    %320 = vrot.lane.b32.xlu0 %v212, 15
    %v321 = vpop.permute.xlu0 %320
    %v322 = vrot.slane %v321, 6
    %vm323 = vcmask 121856
    %v324 = vsel %vm323, %v322, %v321
    %v326 = vmul.f32 %v319, %v324
    %v327 = vstv %s318
    %v328 = vmul.f32 %v327, %v326
    %330 = vrot.lane.b32.xlu0 %v328, 96
    %v331 = vpop.permute.xlu0 %330
    %v332 = vrot.slane %v331, 6
    %vm333 = vcmask 785408
    %v334 = vsel %vm333, %v332, %v331
    %v336 = vadd.f32 %v317, %v334
    %s337 = sld [smem:[#allocation9 + $0x7]]
    %v338 = vld [vmem:[#allocation2 + $0x2] sm:$0x3f]
    %v339 = vstv %s337
    %v340 = vmul.f32 %v339, %v338
    %342 = vrot.lane.b32.xlu0 %v340, 95
    %v343 = vpop.permute.xlu0 %342
    %v344 = vrot.slane %v343, 6
    %vm345 = vcmask 777216
    %v346 = vsel %vm345, %v344, %v343
    %v348 = vadd.f32 %v336, %v346
    %s349 = sld [smem:[#allocation9 + $0x8]]
    %350 = vrot.lane.b32.xlu0 %v252, 17
    %v351 = vpop.permute.xlu0 %350
    %v352 = vrot.slane %v351, 6
    %vm353 = vcmask 138240
    %v354 = vsel %vm353, %v352, %v351
    %v356 = vmul.f32 %v338, %v354
    %v357 = vstv %s349
    %v358 = vmul.f32 %v357, %v356
    %360 = vrot.lane.b32.xlu0 %v358, 94
    %v361 = vpop.permute.xlu0 %360
    %v362 = vrot.slane %v361, 6
    %vm363 = vcmask 769024
    %v364 = vsel %vm363, %v362, %v361
    %v366 = vadd.f32 %v348, %v364
    %v371 = vcombine.low %v133, %v140
    %v373 = vunpack.c.l.s4 1983009808
    %v374 = vunpack.c.0.s8 %v373
    %v375 = vlaneseq
    %v376 = vshrl.u32 %v375, 7
    %v377 = vsub.s32 %v374, %v376
    %v378 = vrot.slane %v371, %v377
    %v379 = vcombine.low %v147, %v154
    %v381 = vunpack.c.l.s4 1983009808
    %v382 = vunpack.c.0.s8 %v381
    %v383 = vlaneseq
    %v384 = vshrl.u32 %v383, 7
    %v385 = vsub.s32 %v382, %v384
    %v386 = vrot.slane %v379, %v385
    %v387 = vsel %vm179, %v378, %v378
    %v388 = vsel %vm181, %v378, %v387
    %v389 = vrot.slane %v386, 7
    %v390 = vsel %vm184, %v389, %v388
    %v391 = vsel %vm186, %v389, %v390
    %v392 = vsel %vm188, %v389, %v391
    %v393 = vsel %vm190, %v389, %v392
    %395 = vst [vmem:[#allocation2 + $0x2] sm:$0xf] %v393
    %s396 = sld [smem:[#allocation9 + $0x9]]
    %v397 = vld [vmem:[#allocation2] sm:$0x3f]
    %v398 = vmul.f32 %v397, %v217
    %v399 = vstv %s396
    %v400 = vmul.f32 %v399, %v398
    %v401 = vadd.f32 %v366, %v400
    %s402 = sld [smem:[#allocation9 + $0xa]]
    %v403 = vld [vmem:[#allocation2] sm:$0x3f]
    %v404 = vstv %s402
    %v405 = vmul.f32 %v404, %v403
    %407 = vrot.lane.b32.xlu0 %v405, 127
    %v408 = vpop.permute.xlu0 %407
    %v409 = vrot.slane %v408, 2
    %v410 = vsel %vm231, %v408, %v409
    %v412 = vadd.f32 %v401, %v410
    %s413 = sld [smem:[#allocation9 + $0xb]]
    %v414 = vmul.f32 %v403, %v257
    %v415 = vstv %s413
    %v416 = vmul.f32 %v415, %v414
    %418 = vrot.lane.b32.xlu0 %v416, 126
    %v419 = vpop.permute.xlu0 %418
    %v420 = vrot.slane %v419, 2
    %v421 = vsel %vm266, %v419, %v420
    %v423 = vadd.f32 %v412, %v421
    %s424 = sld [smem:[#allocation9 + $0xc]]
    %v425 = vld [vmem:[#allocation2] sm:$0x3f]
    %v426 = vmul.f32 %v425, %v275
    %v427 = vstv %s424
    %v428 = vmul.f32 %v427, %v426
    %430 = vrot.lane.b32.xlu0 %v428, 112
    %v431 = vpop.permute.xlu0 %430
    %v432 = vrot.slane %v431, 2
    %v433 = vsel %vm284, %v431, %v432
    %v435 = vadd.f32 %v423, %v433
    %s436 = sld [smem:[#allocation9 + $0xd]]
    %v437 = vld [vmem:[#allocation2 + $0x2] sm:$0xf]
    %v438 = vstv %s436
    %v439 = vmul.f32 %v438, %v437
    %441 = vrot.lane.b32.xlu0 %v439, 111
    %v442 = vpop.permute.xlu0 %441
    %v443 = vrot.slane %v442, 6
    %v444 = vsel %vm216, %v443, %v442
    %v446 = vadd.f32 %v435, %v444
    %s447 = sld [smem:[#allocation9 + $0xe]]
    %v448 = vld [vmem:[#allocation2 + $0x2] sm:$0x3f]
    %v449 = vmul.f32 %v448, %v305
    %v450 = vstv %s447
    %v451 = vmul.f32 %v450, %v449
    %453 = vrot.lane.b32.xlu0 %v451, 110
    %v454 = vpop.permute.xlu0 %453
    %v455 = vrot.slane %v454, 6
    %v456 = vsel %vm314, %v455, %v454
    %v458 = vadd.f32 %v446, %v456
    %s459 = sld [smem:[#allocation9 + $0xf]]
    %v460 = vld [vmem:[#allocation2 + $0x2] sm:$0x3f]
    %v461 = vmul.f32 %v460, %v324
    %v462 = vstv %s459
    %v463 = vmul.f32 %v462, %v461
    %465 = vrot.lane.b32.xlu0 %v463, 96
    %v466 = vpop.permute.xlu0 %465
    %v467 = vrot.slane %v466, 6
    %v468 = vsel %vm333, %v467, %v466
    %v470 = vadd.f32 %v458, %v468
    %s471 = sld [smem:[#allocation9 + $0x10]]
    %v472 = vld [vmem:[#allocation2 + $0x2] sm:$0x3f]
    %v473 = vstv %s471
    %v474 = vmul.f32 %v473, %v472
    %476 = vrot.lane.b32.xlu0 %v474, 95
    %v477 = vpop.permute.xlu0 %476
    %v478 = vrot.slane %v477, 6
    %v479 = vsel %vm345, %v478, %v477
    %v481 = vadd.f32 %v470, %v479
    %s482 = sld [smem:[#allocation9 + $0x11]]
    %v483 = vmul.f32 %v472, %v354
    %v484 = vstv %s482
    %v485 = vmul.f32 %v484, %v483
    %487 = vrot.lane.b32.xlu0 %v485, 94
    %v488 = vpop.permute.xlu0 %487
    %v489 = vrot.slane %v488, 6
    %v490 = vsel %vm363, %v489, %v488
    %v492 = vadd.f32 %v481, %v490
    %494 = vrot.lane.b32.xlu0 %v492, 17
    %v495 = vpop.permute.xlu0 %494
    %v496 = vrot.slane %v495, 2
    %v497 = vsel %vm353, %v495, %v496
    %499 = vst [vmem:[#allocation2 + $0x2] sm:$0xf] %v497
    %s500 = sld [smem:[#allocation10]]
    %v501 = vld [vmem:[#allocation2] sm:$0x3f]
    %v502 = vmul.f32 %v501, %v217
    %v503 = vstv %s500
    %v504 = vmul.f32 %v503, %v502
    %v505 = vadd.f32 %v504, 0.0
    %s506 = sld [smem:[#allocation10 + $0x1]]
    %v507 = vld [vmem:[#allocation2] sm:$0x3f]
    %v508 = vstv %s506
    %v509 = vmul.f32 %v508, %v507
    %511 = vrot.lane.b32.xlu0 %v509, 127
    %v512 = vpop.permute.xlu0 %511
    %v513 = vrot.slane %v512, 2
    %v514 = vsel %vm231, %v512, %v513
    %v516 = vadd.f32 %v505, %v514
    %s517 = sld [smem:[#allocation10 + $0x2]]
    %v518 = vmul.f32 %v507, %v257
    %v519 = vstv %s517
    %v520 = vmul.f32 %v519, %v518
    %522 = vrot.lane.b32.xlu0 %v520, 126
    %v523 = vpop.permute.xlu0 %522
    %v524 = vrot.slane %v523, 2
    %v525 = vsel %vm266, %v523, %v524
    %v527 = vadd.f32 %v516, %v525
    %s528 = sld [smem:[#allocation10 + $0x3]]
    %v529 = vld [vmem:[#allocation2] sm:$0x3f]
    %v530 = vmul.f32 %v529, %v275
    %v531 = vstv %s528
    %v532 = vmul.f32 %v531, %v530
    %534 = vrot.lane.b32.xlu0 %v532, 112
    %v535 = vpop.permute.xlu0 %534
    %v536 = vrot.slane %v535, 2
    %v537 = vsel %vm284, %v535, %v536
    %v539 = vadd.f32 %v527, %v537
    %s540 = sld [smem:[#allocation10 + $0x4]]
    %v541 = vld [vmem:[#allocation2 + $0x2] sm:$0xf]
    %v542 = vstv %s540
    %v543 = vmul.f32 %v542, %v541
    %545 = vrot.lane.b32.xlu0 %v543, 111
    %v546 = vpop.permute.xlu0 %545
    %v547 = vrot.slane %v546, 6
    %v548 = vsel %vm216, %v547, %v546
    %v550 = vadd.f32 %v539, %v548
    %s551 = sld [smem:[#allocation10 + $0x5]]
    %v552 = vld [vmem:[#allocation2 + $0x2] sm:$0x3f]
    %v553 = vmul.f32 %v552, %v305
    %v554 = vstv %s551
    %v555 = vmul.f32 %v554, %v553
    %557 = vrot.lane.b32.xlu0 %v555, 110
    %v558 = vpop.permute.xlu0 %557
    %v559 = vrot.slane %v558, 6
    %v560 = vsel %vm314, %v559, %v558
    %v562 = vadd.f32 %v550, %v560
    %s563 = sld [smem:[#allocation10 + $0x6]]
    %v564 = vld [vmem:[#allocation2 + $0x2] sm:$0x3f]
    %v565 = vmul.f32 %v564, %v324
    %v566 = vstv %s563
    %v567 = vmul.f32 %v566, %v565
    %569 = vrot.lane.b32.xlu0 %v567, 96
    %v570 = vpop.permute.xlu0 %569
    %v571 = vrot.slane %v570, 6
    %v572 = vsel %vm333, %v571, %v570
    %v574 = vadd.f32 %v562, %v572
    %s575 = sld [smem:[#allocation10 + $0x7]]
    %v576 = vld [vmem:[#allocation2 + $0x2] sm:$0x3f]
    %v577 = vstv %s575
    %v578 = vmul.f32 %v577, %v576
    %580 = vrot.lane.b32.xlu0 %v578, 95
    %v581 = vpop.permute.xlu0 %580
    %v582 = vrot.slane %v581, 6
    %v583 = vsel %vm345, %v582, %v581
    %v585 = vadd.f32 %v574, %v583
    %s586 = sld [smem:[#allocation10 + $0x8]]
    %v587 = vmul.f32 %v576, %v354
    %v588 = vstv %s586
    %v589 = vmul.f32 %v588, %v587
    %591 = vrot.lane.b32.xlu0 %v589, 94
    %v592 = vpop.permute.xlu0 %591
    %v593 = vrot.slane %v592, 6
    %v594 = vsel %vm363, %v593, %v592
    %v596 = vadd.f32 %v585, %v594
    %598 = vrot.lane.b32.xlu0 %v596, 17
    %v599 = vpop.permute.xlu0 %598
    %v600 = vrot.slane %v599, 2
    %v601 = vsel %vm353, %v599, %v600
    %603 = vst [vmem:[#allocation2 + $0x2] sm:$0xf] %v601
    %s604 = sld [smem:[#allocation12]]
    %v605 = vld [vmem:[#allocation2] sm:$0x3f]
    %v606 = vmul.f32 %v605, %v217
    %v607 = vstv %s604
    %v608 = vmul.f32 %v607, %v606
    %v609 = vadd.f32 %v608, 0.0
    %s610 = sld [smem:[#allocation12 + $0x1]]
    %v611 = vld [vmem:[#allocation2] sm:$0x3f]
    %v612 = vstv %s610
    %v613 = vmul.f32 %v612, %v611
    %615 = vrot.lane.b32.xlu0 %v613, 127
    %v616 = vpop.permute.xlu0 %615
    %v617 = vrot.slane %v616, 2
    %v618 = vsel %vm231, %v616, %v617
    %v620 = vadd.f32 %v609, %v618
    %s621 = sld [smem:[#allocation12 + $0x2]]
    %v622 = vmul.f32 %v611, %v257
    %v623 = vstv %s621
    %v624 = vmul.f32 %v623, %v622
    %626 = vrot.lane.b32.xlu0 %v624, 126
    %v627 = vpop.permute.xlu0 %626
    %v628 = vrot.slane %v627, 2
    %v629 = vsel %vm266, %v627, %v628
    %v631 = vadd.f32 %v620, %v629
    %s632 = sld [smem:[#allocation12 + $0x3]]
    %v633 = vld [vmem:[#allocation2] sm:$0x3f]
    %v634 = vmul.f32 %v633, %v275
    %v635 = vstv %s632
    %v636 = vmul.f32 %v635, %v634
    %638 = vrot.lane.b32.xlu0 %v636, 112
    %v639 = vpop.permute.xlu0 %638
    %v640 = vrot.slane %v639, 2
    %v641 = vsel %vm284, %v639, %v640
    %v643 = vadd.f32 %v631, %v641
    %s644 = sld [smem:[#allocation12 + $0x4]]
    %v645 = vld [vmem:[#allocation2 + $0x2] sm:$0xf]
    %v646 = vstv %s644
    %v647 = vmul.f32 %v646, %v645
    %649 = vrot.lane.b32.xlu0 %v647, 111
    %v650 = vpop.permute.xlu0 %649
    %v651 = vrot.slane %v650, 6
    %v652 = vsel %vm216, %v651, %v650
    %v654 = vadd.f32 %v643, %v652
    %s655 = sld [smem:[#allocation12 + $0x5]]
    %v656 = vld [vmem:[#allocation2 + $0x2] sm:$0x3f]
    %v657 = vmul.f32 %v656, %v305
    %v658 = vstv %s655
    %v659 = vmul.f32 %v658, %v657
    %661 = vrot.lane.b32.xlu0 %v659, 110
    %v662 = vpop.permute.xlu0 %661
    %v663 = vrot.slane %v662, 6
    %v664 = vsel %vm314, %v663, %v662
    %v666 = vadd.f32 %v654, %v664
    %s667 = sld [smem:[#allocation12 + $0x6]]
    %v668 = vld [vmem:[#allocation2 + $0x2] sm:$0x3f]
    %v669 = vmul.f32 %v668, %v324
    %v670 = vstv %s667
    %v671 = vmul.f32 %v670, %v669
    %673 = vrot.lane.b32.xlu0 %v671, 96
    %v674 = vpop.permute.xlu0 %673
    %v675 = vrot.slane %v674, 6
    %v676 = vsel %vm333, %v675, %v674
    %v678 = vadd.f32 %v666, %v676
    %s679 = sld [smem:[#allocation12 + $0x7]]
    %v680 = vld [vmem:[#allocation2 + $0x2] sm:$0x3f]
    %v681 = vstv %s679
    %v682 = vmul.f32 %v681, %v680
    %684 = vrot.lane.b32.xlu0 %v682, 95
    %v685 = vpop.permute.xlu0 %684
    %v686 = vrot.slane %v685, 6
    %v687 = vsel %vm345, %v686, %v685
    %v689 = vadd.f32 %v678, %v687
    %s690 = sld [smem:[#allocation12 + $0x8]]
    %v691 = vmul.f32 %v680, %v354
    %v692 = vstv %s690
    %v693 = vmul.f32 %v692, %v691
    %695 = vrot.lane.b32.xlu0 %v693, 94
    %v696 = vpop.permute.xlu0 %695
    %v697 = vrot.slane %v696, 6
    %v698 = vsel %vm363, %v697, %v696
    %v700 = vadd.f32 %v689, %v698
    %v701 = vxor.u32 %v700, 2147483648
    %v702 = vmul.f32 %v701, 1.442695
    %v703 = vpow.pop %v702
    %v704 = vadd.f32 %v703, 1.0
    %v705 = vrcp.pop %v704
    %v706 = vmul.f32 1.0, %v705
    %v709 = vunpack.c.l.s4 1966171168
    %v710 = vunpack.c.0.s8 %v709
    %v711 = vlaneseq
    %v712 = vshrl.u32 %v711, 7
    %v713 = vsub.s32 %v710, %v712
    %v714 = vrot.slane %v706, %v713
    %v715 = vcombine.high %v714, %v714
    %v716 = vlaneseq
    %v717 = vshrl.u32 %v716, 7
    %v718 = vsub.s32 0, %v717
    %v719 = vrot.slane %v714, %v718
    %v720 = vlaneseq
    %v721 = vshrl.u32 %v720, 7
    %v722 = vsub.s32 1, %v721
    %v723 = vrot.slane %v714, %v722
    %v724 = vlaneseq
    %v725 = vshrl.u32 %v724, 7
    %v726 = vsub.s32 2, %v725
    %v727 = vrot.slane %v714, %v726
    %v728 = vlaneseq
    %v729 = vshrl.u32 %v728, 7
    %v730 = vsub.s32 0, %v729
    %v731 = vrot.slane %v715, %v730
    %v732 = vlaneseq
    %v733 = vshrl.u32 %v732, 7
    %v734 = vsub.s32 1, %v733
    %v735 = vrot.slane %v715, %v734
    %v736 = vlaneseq
    %v737 = vshrl.u32 %v736, 7
    %v738 = vsub.s32 2, %v737
    %v739 = vrot.slane %v715, %v738
    %v740 = vcombine.low %v719, %v723
    %v741 = vcombine.low %v731, %v735
    %742 = vrot.lane.b32.xlu0 %v740, 17
    %v743 = vpop.permute.xlu0 %742
    %744 = vrot.lane.b32.xlu0 %v727, 17
    %v745 = vpop.permute.xlu0 %744
    %746 = vrot.lane.b32.xlu0 %v741, 17
    %v747 = vpop.permute.xlu0 %746
    %748 = vrot.lane.b32.xlu0 %v739, 17
    %v749 = vpop.permute.xlu0 %748
    %v750 = vrot.slane %v743, 4
    %v751 = vrot.slane %v745, 4
    %v752 = vrot.slane %v747, 4
    %v753 = vrot.slane %v749, 4
    %v754 = vsel %vm93, %v750, %v751
    %v755 = vsel %vm353, %v743, %v754
    %v756 = vsel %vm93, %v752, %v753
    %v757 = vsel %vm353, %v747, %v756
    %v760 = vmul.f32 %v85, %v755
    %v761 = vmul.f32 %v86, %v757
    %762 = vst [vmem:[#allocation13] sm:$0xff] %v760
    %763 = vst [vmem:[#allocation13 + $0x8] sm:$0xff] %v761
    // Predicated region
    $region42: #{tpu_custom_call.1} parent=1 // pred_check
      _
    $region43: #{tpu_custom_call.1} parent=1 // pred_check_branch
      %765 = sbr.rel (0) target = $region45
    $region44: #{tpu_custom_call.1} parent=1 // pred_region
      %s767 = ssub.s32 256, 256
      %768 = vsyncadd [#allocation5], %s767
      %s769 = sshll.u32 [#allocation13], 4
      %s770 = int_to_ptr.vmem [resolvable:$true] %s769
      %775 = dma.vmem_to_hbm [thread:$0]  %s770, 256, %s5, [#allocation5], 128, 128, 8
    $region45: #{tpu_custom_call.1} parent=1 // pred_fallthru
      _
    // Predicated region
    $region46: #{tpu_custom_call.1} parent=1 // pred_check
      _
    $region47: #{tpu_custom_call.1} parent=1 // pred_check_branch
      %777 = sbr.rel (0) target = $region49
    $region48: #{tpu_custom_call.1} parent=1 // pred_region
      %778 = dma.done [#allocation5], 256
    $region49: #{tpu_custom_call.1} parent=1 // pred_fallthru
      _
    %779 = vsyncpa [#allocation4], 1
    %780 = vsyncpa [#allocation8], 1
    %781 = vsyncpa [#allocation5], 1
    %782 = vsyncpa [#allocation6], 1
    %783 = vsyncpa [#allocation11], 1

</llo_original>
